<compile_context>
chip_gen: v5e
topology: v5e:2x2
jax: 0.10.0
libtpu: 0.0.40
codegen_flags: <defaults>
</compile_context>

<pallas_src>
import functools

import jax
import jax.numpy as jnp
from jax.experimental import pallas as pl
from jax.experimental.pallas import tpu as pltpu

_ROW_QUANT = 16        # bf16 sublane packing quantum for the batch (rows) axis.
_MIN_SPLIT_ROWS = 512  # force >=2 grid steps (v7x dual-TC) once batch >= 2*this.


def _round_up(n, m):
    return ((n + m - 1) // m) * m


def qnetwork_kernel(x_ref, w1_ref, b1_ref, w2_ref, b2_ref, w3_ref, b3_ref, o_ref):
    # One (tm, state_size) bf16 batch tile per grid step; weights/biases are
    # VMEM-resident across tiles (constant index_maps).
    x = x_ref[...]

    # fc1 + ReLU: bf16 MXU matmul, f32 accumulate; epilogue kept in f32 (v5e VPU).
    h1 = jnp.dot(x, w1_ref[...], preferred_element_type=jnp.float32) + b1_ref[...]
    h1 = jnp.maximum(h1, 0.0)

    # fc2 + ReLU
    h2 = jnp.dot(h1.astype(jnp.bfloat16), w2_ref[...],
                 preferred_element_type=jnp.float32) + b2_ref[...]
    h2 = jnp.maximum(h2, 0.0)

    # fc3: un-padded action_size output (lane-masked store, irrelevant at this size).
    out = jnp.dot(h2.astype(jnp.bfloat16), w3_ref[...],
                  preferred_element_type=jnp.float32) + b3_ref[...]
    o_ref[...] = out.astype(o_ref.dtype)


def init_params(key, state_size, action_size, lin1_dim=64, lin2_dim=64):
    """Deterministic init mimicking nn.Linear default U(-1/sqrt(fan_in), 1/sqrt(fan_in))."""
    keys = jax.random.split(key, 6)

    def linear(kw, kb, fan_in, fan_out):
        bound = 1.0 / jnp.sqrt(fan_in)
        w = jax.random.uniform(kw, (fan_in, fan_out), jnp.float32, -bound, bound)
        b = jax.random.uniform(kb, (1, fan_out), jnp.float32, -bound, bound)
        return w, b

    w1, b1 = linear(keys[0], keys[1], state_size, lin1_dim)
    w2, b2 = linear(keys[2], keys[3], lin1_dim, lin2_dim)
    w3, b3 = linear(keys[4], keys[5], lin2_dim, action_size)
    return (w1, b1, w2, b2, w3, b3)


def prepare_params(params):
    """One-time prep: bf16 weights for the MXU, f32 biases. No output padding."""
    w1, b1, w2, b2, w3, b3 = params
    action_size = int(w3.shape[1])
    prepared = (w1.astype(jnp.bfloat16), b1.astype(jnp.float32),
                w2.astype(jnp.bfloat16), b2.astype(jnp.float32),
                w3.astype(jnp.bfloat16), b3.astype(jnp.float32))
    return prepared, action_size


@functools.partial(jax.jit, static_argnames=("tm",))
def qnetwork_forward(x, prepared_params, tm=1024):
    w1, b1, w2, b2, w3, b3 = prepared_params
    batch, state_size = x.shape
    action_size = w3.shape[1]

    # bf16 input feeds the MXU directly (halves x HBM read / VMEM tile).
    x = x.astype(jnp.bfloat16)

    # Pad the batch only to the 16-row quantum, then derive the tile size from
    # the tile count so per-tile padding waste is <= 15 rows.
    pad_rows = _round_up(batch, _ROW_QUANT)
    n_tiles = max(1, -(-pad_rows // tm))
    if pad_rows >= 2 * _MIN_SPLIT_ROWS:
        # Large batch: guarantee >=2 grid steps so v7x's two TensorCores both
        # get work via the "parallel" batch axis (no-op on single-TC v5e/v6e).
        n_tiles = max(n_tiles, 2)
    tile_m = _round_up(-(-pad_rows // n_tiles), _ROW_QUANT)
    padded_batch = n_tiles * tile_m
    if padded_batch != batch:
        x = jnp.pad(x, ((0, padded_batch - batch), (0, 0)))

    resident = lambda arr: pl.BlockSpec(arr.shape, lambda i: (0, 0))

    out_padded = pl.pallas_call(
        qnetwork_kernel,
        out_shape=jax.ShapeDtypeStruct((padded_batch, action_size), jnp.float32),
        grid=(n_tiles,),
        in_specs=[
            pl.BlockSpec((tile_m, state_size), lambda i: (i, 0)),  # x: batch-tiled
            resident(w1), resident(b1),
            resident(w2), resident(b2),
            resident(w3), resident(b3),
        ],
        out_specs=pl.BlockSpec((tile_m, action_size), lambda i: (i, 0)),
        compiler_params=pltpu.CompilerParams(
            dimension_semantics=("parallel",)),  # shard batch tiles across v7x's 2 TCs
    )(x, w1, b1, w2, b2, w3, b3)

    return out_padded[:batch, :]


if __name__ == "__main__":
    # Small shapes consistent with the module: state_size=8, action_size=4, hidden=64.
    batch, state_size, action_size = 2, 8, 4
    key = jax.random.PRNGKey(0)
    k_params, k_x = jax.random.split(key)

    raw_params = init_params(k_params, state_size, action_size)
    prepared, act = prepare_params(raw_params)
    x = jax.random.normal(k_x, (batch, state_size), dtype=jnp.float32)

    out = qnetwork_forward(x, prepared)
    out = jax.block_until_ready(out)

    # Reference matching the kernel's exact compute path (bf16 operands, f32 accumulate).
    w1, b1, w2, b2, w3, b3 = raw_params
    bf = lambda a: a.astype(jnp.bfloat16)
    ref = jnp.maximum(jnp.dot(bf(x), bf(w1), preferred_element_type=jnp.float32) + b1, 0.0)
    ref = jnp.maximum(jnp.dot(bf(ref), bf(w2), preferred_element_type=jnp.float32) + b2, 0.0)
    ref = jnp.dot(bf(ref), bf(w3), preferred_element_type=jnp.float32) + b3

    assert out.shape == (batch, action_size)
    assert jnp.allclose(out, ref, atol=1e-3, rtol=1e-3)

    # Loose sanity check against full-f32 math (bf16 operand rounding only).
    ref32 = jnp.maximum(x @ w1 + b1, 0.0)
    ref32 = jnp.maximum(ref32 @ w2 + b2, 0.0)
    ref32 = ref32 @ w3 + b3
    assert jnp.allclose(out, ref32, atol=1e-1, rtol=1e-1)

    print("KERNEL_OK")
</pallas_src>

<mosaic_0001>
module attributes {stable_mosaic.version = 11 : i64} {
  func.func @qnetwork_kernel(%arg0: i32, %arg1: memref<16x8xbf16, #tpu.memory_space<vmem>>, %arg2: memref<8x64xbf16, #tpu.memory_space<vmem>>, %arg3: memref<1x64xf32, #tpu.memory_space<vmem>>, %arg4: memref<64x64xbf16, #tpu.memory_space<vmem>>, %arg5: memref<1x64xf32, #tpu.memory_space<vmem>>, %arg6: memref<64x4xbf16, #tpu.memory_space<vmem>>, %arg7: memref<1x4xf32, #tpu.memory_space<vmem>>, %arg8: memref<16x4xf32, #tpu.memory_space<vmem>>) attributes {dimension_semantics = [#tpu.dimension_semantics<parallel>], iteration_bounds = array<i64: 1>, scalar_prefetch = 0 : i64, scratch_operands = 0 : i64, tpu.core_type = #tpu.core_type<tc>, window_params = [{transform_indices = @transform_0, window_bounds = array<i64: 16, 8>}, {pipeline_mode = #tpu.pipeline_mode<synchronous>, transform_indices = @transform_1, window_bounds = array<i64: 8, 64>}, {pipeline_mode = #tpu.pipeline_mode<synchronous>, transform_indices = @transform_2, window_bounds = array<i64: 1, 64>}, {pipeline_mode = #tpu.pipeline_mode<synchronous>, transform_indices = @transform_3, window_bounds = array<i64: 64, 64>}, {pipeline_mode = #tpu.pipeline_mode<synchronous>, transform_indices = @transform_4, window_bounds = array<i64: 1, 64>}, {pipeline_mode = #tpu.pipeline_mode<synchronous>, transform_indices = @transform_5, window_bounds = array<i64: 64, 4>}, {pipeline_mode = #tpu.pipeline_mode<synchronous>, transform_indices = @transform_6, window_bounds = array<i64: 1, 4>}, {transform_indices = @transform_7, window_bounds = array<i64: 16, 4>}]} {
    %c0 = arith.constant 0 : index
    %c0_0 = arith.constant 0 : index
    %0 = vector.load %arg1[%c0, %c0_0] : memref<16x8xbf16, #tpu.memory_space<vmem>>, vector<16x8xbf16>
    %c0_1 = arith.constant 0 : index
    %c0_2 = arith.constant 0 : index
    %1 = vector.load %arg2[%c0_1, %c0_2] : memref<8x64xbf16, #tpu.memory_space<vmem>>, vector<8x64xbf16>
    %cst = arith.constant dense<0.000000e+00> : vector<16x64xf32>
    %2 = tpu.matmul %0, %1, %cst {dimension_numbers = #tpu.dot_dimension_numbers<[1], [0], [0], [1], [0, 0, 1, 1], [], []>} : vector<16x8xbf16>, vector<8x64xbf16>, vector<16x64xf32> -> vector<16x64xf32>
    %c0_3 = arith.constant 0 : index
    %c0_4 = arith.constant 0 : index
    %3 = vector.load %arg3[%c0_3, %c0_4] : memref<1x64xf32, #tpu.memory_space<vmem>>, vector<1x64xf32>
    %4 = vector.broadcast %3 : vector<1x64xf32> to vector<16x64xf32>
    %5 = arith.addf %2, %4 : vector<16x64xf32>
    %cst_5 = arith.constant 0.000000e+00 : f32
    %6 = vector.broadcast %cst_5 : f32 to vector<16x64xf32>
    %7 = arith.maximumf %5, %6 : vector<16x64xf32>
    %8 = arith.truncf %7 : vector<16x64xf32> to vector<16x64xbf16>
    %c0_6 = arith.constant 0 : index
    %c0_7 = arith.constant 0 : index
    %9 = vector.load %arg4[%c0_6, %c0_7] : memref<64x64xbf16, #tpu.memory_space<vmem>>, vector<64x64xbf16>
    %cst_8 = arith.constant dense<0.000000e+00> : vector<16x64xf32>
    %10 = tpu.matmul %8, %9, %cst_8 {dimension_numbers = #tpu.dot_dimension_numbers<[1], [0], [0], [1], [0, 0, 1, 1], [], []>} : vector<16x64xbf16>, vector<64x64xbf16>, vector<16x64xf32> -> vector<16x64xf32>
    %c0_9 = arith.constant 0 : index
    %c0_10 = arith.constant 0 : index
    %11 = vector.load %arg5[%c0_9, %c0_10] : memref<1x64xf32, #tpu.memory_space<vmem>>, vector<1x64xf32>
    %12 = vector.broadcast %11 : vector<1x64xf32> to vector<16x64xf32>
    %13 = arith.addf %10, %12 : vector<16x64xf32>
    %cst_11 = arith.constant 0.000000e+00 : f32
    %14 = vector.broadcast %cst_11 : f32 to vector<16x64xf32>
    %15 = arith.maximumf %13, %14 : vector<16x64xf32>
    %16 = arith.truncf %15 : vector<16x64xf32> to vector<16x64xbf16>
    %c0_12 = arith.constant 0 : index
    %c0_13 = arith.constant 0 : index
    %17 = vector.load %arg6[%c0_12, %c0_13] : memref<64x4xbf16, #tpu.memory_space<vmem>>, vector<64x4xbf16>
    %cst_14 = arith.constant dense<0.000000e+00> : vector<16x4xf32>
    %18 = tpu.matmul %16, %17, %cst_14 {dimension_numbers = #tpu.dot_dimension_numbers<[1], [0], [0], [1], [0, 0, 1, 1], [], []>} : vector<16x64xbf16>, vector<64x4xbf16>, vector<16x4xf32> -> vector<16x4xf32>
    %c0_15 = arith.constant 0 : index
    %c0_16 = arith.constant 0 : index
    %19 = vector.load %arg7[%c0_15, %c0_16] : memref<1x4xf32, #tpu.memory_space<vmem>>, vector<1x4xf32>
    %20 = vector.broadcast %19 : vector<1x4xf32> to vector<16x4xf32>
    %21 = arith.addf %18, %20 : vector<16x4xf32>
    %c0_17 = arith.constant 0 : index
    %c0_18 = arith.constant 0 : index
    %22 = vector.load %arg8[%c0_17, %c0_18] : memref<16x4xf32, #tpu.memory_space<vmem>>, vector<16x4xf32>
    tpu.vector_store %arg8[%c0_17, %c0_18], %21 {strides = array<i32>} : memref<16x4xf32, #tpu.memory_space<vmem>>, vector<16x4xf32>,
    return
  }
  func.func @transform_0(%arg0: i32) -> (i32, i32) {
    %c0_i32 = arith.constant 0 : i32
    %c0_i32_0 = arith.constant 0 : i32
    return %arg0, %c0_i32 : i32, i32
  }
  func.func @transform_1(%arg0: i32) -> (i32, i32) {
    %c0_i32 = arith.constant 0 : i32
    %c0_i32_0 = arith.constant 0 : i32
    %c0_i32_1 = arith.constant 0 : i32
    return %c0_i32, %c0_i32_0 : i32, i32
  }
  func.func @transform_2(%arg0: i32) -> (i32, i32) {
    %c0_i32 = arith.constant 0 : i32
    %c0_i32_0 = arith.constant 0 : i32
    %c0_i32_1 = arith.constant 0 : i32
    return %c0_i32, %c0_i32_0 : i32, i32
  }
  func.func @transform_3(%arg0: i32) -> (i32, i32) {
    %c0_i32 = arith.constant 0 : i32
    %c0_i32_0 = arith.constant 0 : i32
    %c0_i32_1 = arith.constant 0 : i32
    return %c0_i32, %c0_i32_0 : i32, i32
  }
  func.func @transform_4(%arg0: i32) -> (i32, i32) {
    %c0_i32 = arith.constant 0 : i32
    %c0_i32_0 = arith.constant 0 : i32
    %c0_i32_1 = arith.constant 0 : i32
    return %c0_i32, %c0_i32_0 : i32, i32
  }
  func.func @transform_5(%arg0: i32) -> (i32, i32) {
    %c0_i32 = arith.constant 0 : i32
    %c0_i32_0 = arith.constant 0 : i32
    %c0_i32_1 = arith.constant 0 : i32
    return %c0_i32, %c0_i32_0 : i32, i32
  }
  func.func @transform_6(%arg0: i32) -> (i32, i32) {
    %c0_i32 = arith.constant 0 : i32
    %c0_i32_0 = arith.constant 0 : i32
    %c0_i32_1 = arith.constant 0 : i32
    return %c0_i32, %c0_i32_0 : i32, i32
  }
  func.func @transform_7(%arg0: i32) -> (i32, i32) {
    %c0_i32 = arith.constant 0 : i32
    %c0_i32_0 = arith.constant 0 : i32
    return %arg0, %c0_i32 : i32, i32
  }
}

</mosaic_0001>

<llo_original>
// kernel: qnetwork_forward.1
$region0: #{qnetwork_forward.1}
  #allocation0 [shape = 'u32[]', space=smem, size = 0x4, offset = 0x4, fixed_abs, tag = 'smem constant byte address 0x4 - core index']
  #allocation1 [shape = 'u32[72,128]{1,0:T(1,128)}', space=vmem, size = 0x9000, scoped, tag = 'internal scratch']
  %s0 = inlined_call_operand.vmem [shape: bf16[16,8], index: 0, kind: input, shape index: {}]
  %s1 = inlined_call_operand.vmem [shape: bf16[8,64], index: 1, kind: input, shape index: {}]
  %s2 = inlined_call_operand.vmem [shape: f32[1,64], index: 2, kind: input, shape index: {}]
  %s3 = inlined_call_operand.vmem [shape: bf16[64,64], index: 3, kind: input, shape index: {}]
  %s4 = inlined_call_operand.vmem [shape: f32[1,64], index: 4, kind: input, shape index: {}]
  %s5 = inlined_call_operand.vmem [shape: bf16[64,4], index: 5, kind: input, shape index: {}]
  %s6 = inlined_call_operand.vmem [shape: f32[1,4], index: 6, kind: input, shape index: {}]
  %s7 = inlined_call_operand.vmem [shape: f32[16,4], index: 7, kind: output, shape index: {}]
  %s8 = sld [smem:[#allocation0]]
  $region38: #{qnetwork_forward.1} parent=0
    _
  %s10 = ssub.s32 1, %s8
  %s11 = scalar_select 0, %s10, %s8
  // Predicated region
  $region2: #{qnetwork_forward.1} parent=0 // pred_check
    _
  $region3: #{qnetwork_forward.1} parent=0 // pred_check_branch
    %13 = sbr.rel (0) target = $region5
  $region4: #{qnetwork_forward.1} parent=0 // pred_region
    _
  $region5: #{qnetwork_forward.1} parent=0 // pred_fallthru
    _
  // Predicated region
  $region6: #{qnetwork_forward.1} parent=0 // pred_check
    _
  $region7: #{qnetwork_forward.1} parent=0 // pred_check_branch
    %15 = sbr.rel (0) target = $region9
  $region8: #{qnetwork_forward.1} parent=0 // pred_region
    _
  $region9: #{qnetwork_forward.1} parent=0 // pred_fallthru
    _
  // Predicated region
  $region10: #{qnetwork_forward.1} parent=0 // pred_check
    _
  $region11: #{qnetwork_forward.1} parent=0 // pred_check_branch
    %17 = sbr.rel (0) target = $region13
  $region12: #{qnetwork_forward.1} parent=0 // pred_region
    _
  $region13: #{qnetwork_forward.1} parent=0 // pred_fallthru
    _
  // Predicated region
  $region14: #{qnetwork_forward.1} parent=0 // pred_check
    _
  $region15: #{qnetwork_forward.1} parent=0 // pred_check_branch
    %19 = sbr.rel (0) target = $region17
  $region16: #{qnetwork_forward.1} parent=0 // pred_region
    _
  $region17: #{qnetwork_forward.1} parent=0 // pred_fallthru
    _
  // Predicated region
  $region18: #{qnetwork_forward.1} parent=0 // pred_check
    _
  $region19: #{qnetwork_forward.1} parent=0 // pred_check_branch
    %21 = sbr.rel (0) target = $region21
  $region20: #{qnetwork_forward.1} parent=0 // pred_region
    _
  $region21: #{qnetwork_forward.1} parent=0 // pred_fallthru
    _
  // Predicated region
  $region22: #{qnetwork_forward.1} parent=0 // pred_check
    _
  $region23: #{qnetwork_forward.1} parent=0 // pred_check_branch
    %23 = sbr.rel (0) target = $region25
  $region24: #{qnetwork_forward.1} parent=0 // pred_region
    _
  $region25: #{qnetwork_forward.1} parent=0 // pred_fallthru
    _
  // Predicated region
  $region26: #{qnetwork_forward.1} parent=0 // pred_check
    _
  $region27: #{qnetwork_forward.1} parent=0 // pred_check_branch
    %25 = sbr.rel (0) target = $region29
  $region28: #{qnetwork_forward.1} parent=0 // pred_region
    _
  $region29: #{qnetwork_forward.1} parent=0 // pred_fallthru
    _
  %v27 = vld [vmem:[%s0] sm:$0xf]
  %v28 = vld [vmem:[%s0 + $0x4] sm:$0xf]
  %v29 = vld [vmem:[%s1] sm:$0xf]
  %v30 = vld [vmem:[%s2] sm:$0x1]
  %v32 = vperm.slane %v30, 0
  %v36 = vunpack.c.l.b16 %v27
  %v37 = vunpack.c.l.b16 %v28
  %v38 = vpack.c.b16 %v37, %v36
  %vm39 = vcmask 64512
  %v41 = vsel %vm39, %v38, 0
  %vm43 = vcmask 1043456
  %v45 = vsel %vm43, %v29, 0
  %47 = vmatpush.bf16.msra.mxu0 0
  %48 = vmatpush.bf16.msra.mxu0 0
  %49 = vmatpush.bf16.msra.mxu0 0
  %50 = vmatpush.bf16.msra.mxu0 0
  %51 = vmatpush.bf16.msra.mxu0 0
  %52 = vmatpush.bf16.msra.mxu0 0
  %53 = vmatpush.bf16.msra.mxu0 0
  %54 = vmatpush.bf16.msra.mxu0 %v45
  %55 = vmatmul.bf16.gmra.mxu0 %v41
  %v56 = vpop.f32.mrf.mxu0
  %v57 = vadd.f32 %v32, %v56
  %v58 = vpop.f32.mrf.mxu0
  %v59 = vadd.f32 %v32, %v58
  %60 = vdwg.mxu0
  %v61 = vmax.f32 %v57, 0.0
  %v62 = vmax.f32 %v59, 0.0
  %v63 = vpack.c.bf16 %v62, %v61
  %v64 = vld [vmem:[%s3] sm:$0xf]
  %v65 = vld [vmem:[%s3 + $0x4] sm:$0xf]
  %v66 = vld [vmem:[%s3 + $0x8] sm:$0xf]
  %v67 = vld [vmem:[%s3 + $0xc] sm:$0xf]
  %v68 = vld [vmem:[%s3 + $0x10] sm:$0xf]
  %v69 = vld [vmem:[%s3 + $0x14] sm:$0xf]
  %v70 = vld [vmem:[%s3 + $0x18] sm:$0xf]
  %v71 = vld [vmem:[%s3 + $0x1c] sm:$0xf]
  %v72 = vld [vmem:[%s4] sm:$0x1]
  %v74 = vperm.slane %v72, 0
  %v84 = vunpack.c.l.b16 %v64
  %v85 = vunpack.c.l.b16 %v65
  %v86 = vunpack.c.l.b16 %v66
  %v87 = vunpack.c.l.b16 %v67
  %v88 = vunpack.c.l.b16 %v68
  %v89 = vunpack.c.l.b16 %v69
  %v90 = vunpack.c.l.b16 %v70
  %v91 = vunpack.c.l.b16 %v71
  %v92 = vpack.c.b16 %v85, %v84
  %v93 = vpack.c.b16 %v87, %v86
  %v94 = vpack.c.b16 %v89, %v88
  %v95 = vpack.c.b16 %v91, %v90
  %vm100 = vcmask 523264
  %v102 = vsel %vm100, %v63, 0
  %104 = vmatpush.bf16.msra.mxu0 0
  %105 = vmatpush.bf16.msra.mxu0 0
  %106 = vmatpush.bf16.msra.mxu0 0
  %107 = vmatpush.bf16.msra.mxu0 0
  %108 = vmatpush.bf16.msra.mxu0 %v95
  %109 = vmatpush.bf16.msra.mxu0 %v94
  %110 = vmatpush.bf16.msra.mxu0 %v93
  %111 = vmatpush.bf16.msra.mxu0 %v92
  %112 = vmatmul.bf16.gmra.mxu0 %v102
  %v113 = vpop.f32.mrf.mxu0
  %v114 = vadd.f32 %v74, %v113
  %v115 = vpop.f32.mrf.mxu0
  %v116 = vadd.f32 %v74, %v115
  %117 = vdwg.mxu0
  %v118 = vmax.f32 %v114, 0.0
  %v119 = vmax.f32 %v116, 0.0
  %v120 = vpack.c.bf16 %v119, %v118
  %v121 = vld [vmem:[%s5] sm:$0xf]
  %v122 = vld [vmem:[%s5 + $0x4] sm:$0xf]
  %v123 = vld [vmem:[%s5 + $0x8] sm:$0xf]
  %v124 = vld [vmem:[%s5 + $0xc] sm:$0xf]
  %v125 = vld [vmem:[%s5 + $0x10] sm:$0xf]
  %v126 = vld [vmem:[%s5 + $0x14] sm:$0xf]
  %v127 = vld [vmem:[%s5 + $0x18] sm:$0xf]
  %v128 = vld [vmem:[%s5 + $0x1c] sm:$0xf]
  %v129 = vld [vmem:[%s6] sm:$0x1]
  %v131 = vperm.slane %v129, 0
  %v141 = vunpack.c.l.b16 %v121
  %v142 = vunpack.c.l.b16 %v122
  %v143 = vunpack.c.l.b16 %v123
  %v144 = vunpack.c.l.b16 %v124
  %v145 = vunpack.c.l.b16 %v125
  %v146 = vunpack.c.l.b16 %v126
  %v147 = vunpack.c.l.b16 %v127
  %v148 = vunpack.c.l.b16 %v128
  %v149 = vpack.c.b16 %v142, %v141
  %v150 = vpack.c.b16 %v144, %v143
  %v151 = vpack.c.b16 %v146, %v145
  %v152 = vpack.c.b16 %v148, %v147
  %v158 = vsel %vm100, %v120, 0
  %160 = vmatpush.bf16.msra.mxu0 0
  %161 = vmatpush.bf16.msra.mxu0 0
  %162 = vmatpush.bf16.msra.mxu0 0
  %163 = vmatpush.bf16.msra.mxu0 0
  %164 = vmatpush.bf16.msra.mxu0 %v152
  %165 = vmatpush.bf16.msra.mxu0 %v151
  %166 = vmatpush.bf16.msra.mxu0 %v150
  %167 = vmatpush.bf16.msra.mxu0 %v149
  %168 = vmatmul.bf16.gmra.mxu0 %v158
  %v169 = vpop.f32.mrf.mxu0
  %v170 = vadd.f32 %v131, %v169
  %v171 = vpop.f32.mrf.mxu0
  %v172 = vadd.f32 %v131, %v171
  %173 = vdwg.mxu0
  %vm174 = vcmask 31744
  %175 = vst.msk [vmem:[%s7] sm:$0xff] %vm174, %v170
  %176 = vst.msk [vmem:[%s7 + $0x8] sm:$0xff] %vm174, %v172
  // Predicated region
  $region30: #{qnetwork_forward.1} parent=0 // pred_check
    _
  $region31: #{qnetwork_forward.1} parent=0 // pred_check_branch
    %178 = sbr.rel (0) target = $region33
  $region32: #{qnetwork_forward.1} parent=0 // pred_region
    _
  $region33: #{qnetwork_forward.1} parent=0 // pred_fallthru
    _
  // Predicated region
  $region34: #{qnetwork_forward.1} parent=0 // pred_check
    _
  $region35: #{qnetwork_forward.1} parent=0 // pred_check_branch
    %180 = sbr.rel (0) target = $region37
  $region36: #{qnetwork_forward.1} parent=0 // pred_region
    _
  $region37: #{qnetwork_forward.1} parent=0 // pred_fallthru
    _

</llo_original>
